<compile_context>
chip_gen: v5e
topology: v5e:2x2
jax: 0.10.0
libtpu: 0.0.40
codegen_flags: <defaults>
</compile_context>

<pallas_src>
import jax
import jax.numpy as jnp
from jax.experimental import pallas as pl
from jax.experimental.pallas import tpu as pltpu


def _round_up(x: int, m: int) -> int:
    return ((x + m - 1) // m) * m


def _center_loss_kernel(out_ref, tgt_ref, partial_ref):
    # out_ref / tgt_ref: (tm, lane_width) VMEM tiles.
    # partial_ref:       (1, 1, lane_width) per-tile per-lane partial sums.
    diff = out_ref[...].astype(jnp.float32) - tgt_ref[...].astype(jnp.float32)
    # Reduce over sublanes only (cheap); the cross-lane / cross-tile reduction
    # is finished outside the kernel on a tiny array.
    partial_ref[0] = jnp.sum(diff * diff, axis=0, keepdims=True)


def center_loss(outputs: jax.Array, targets: jax.Array, *,
                lane_width: int = 512,
                max_tile_bytes: int = 8 << 20) -> jax.Array:
    """sum((outputs - targets)**2) / outputs.shape[0], computed via Pallas on TPU."""
    assert outputs.shape == targets.shape, "outputs/targets must have identical shapes"
    assert lane_width % 128 == 0
    batch = outputs.shape[0]

    itemsize = jnp.dtype(outputs.dtype).itemsize
    sublane = max(8, 32 // itemsize)  # 8 for f32, 16 for bf16, 32 for int8/fp8

    n = outputs.size
    o = outputs.reshape(-1)
    t = targets.reshape(-1)

    # Lane-dense slab: pad the flat length to a multiple of lane_width.
    n_pad = _round_up(n, lane_width)
    if n_pad != n:
        o = jnp.pad(o, (0, n_pad - n))
        t = jnp.pad(t, (0, n_pad - n))
    rows = n_pad // lane_width
    o2 = o.reshape(rows, lane_width)
    t2 = t.reshape(rows, lane_width)

    # Row tile: as large as the per-input VMEM budget allows, multiple of the
    # packed-sublane count for the input dtype.
    max_tm = max(sublane,
                 (max_tile_bytes // (lane_width * itemsize)) // sublane * sublane)
    tm = min(max_tm, _round_up(rows, sublane))
    rows_pad = _round_up(rows, tm)
    if rows_pad != rows:
        o2 = jnp.pad(o2, ((0, rows_pad - rows), (0, 0)))
        t2 = jnp.pad(t2, ((0, rows_pad - rows), (0, 0)))
    num_tiles = rows_pad // tm

    tile_bytes = tm * lane_width * itemsize
    # 2 inputs x 2 pipeline buffers x tile + slack; capped well under the
    # 64 MiB per-TC VMEM of v7x (128 MiB on v5e/v6e).
    vmem_limit = int(min(max(4 * tile_bytes + (2 << 20), 16 << 20), 48 << 20))

    partials = pl.pallas_call(
        _center_loss_kernel,
        out_shape=jax.ShapeDtypeStruct((num_tiles, 1, lane_width), jnp.float32),
        grid_spec=pltpu.PrefetchScalarGridSpec(
            num_scalar_prefetch=0,
            grid=(num_tiles,),
            in_specs=[
                pl.BlockSpec((tm, lane_width), lambda i: (i, 0)),
                pl.BlockSpec((tm, lane_width), lambda i: (i, 0)),
            ],
            out_specs=pl.BlockSpec((1, 1, lane_width), lambda i: (i, 0, 0)),
        ),
        compiler_params=pltpu.CompilerParams(
            dimension_semantics=("parallel",),  # independent tiles -> megacore sharding
            vmem_limit_bytes=vmem_limit,
        ),
        cost_estimate=pl.CostEstimate(
            flops=3 * n,
            transcendentals=0,
            bytes_accessed=2 * n * itemsize + num_tiles * lane_width * 4,
        ),
    )(o2, t2)

    # Tiny final reduction + division by batch size (cheap scalar glue).
    return jnp.sum(partials) / jnp.float32(batch)


if __name__ == "__main__":
    key = jax.random.PRNGKey(0)
    k1, k2, k3, k4 = jax.random.split(key, 4)

    # Small, deterministic example: batch=16, feature dim=256.
    B, D = 16, 256
    outputs = jax.random.normal(k1, (B, D), dtype=jnp.float32)
    targets = jax.random.normal(k2, (B, D), dtype=jnp.float32)

    loss = jax.block_until_ready(center_loss(outputs, targets))
    ref = jnp.sum((outputs - targets) ** 2) / B
    assert jnp.allclose(loss, ref, rtol=1e-5, atol=1e-5), (loss, ref)

    # Non-aligned shape to exercise the padding path (B=6, D=100).
    outputs2 = jax.random.normal(k3, (6, 100), dtype=jnp.float32)
    targets2 = jax.random.normal(k4, (6, 100), dtype=jnp.float32)
    loss2 = jax.block_until_ready(center_loss(outputs2, targets2))
    ref2 = jnp.sum((outputs2 - targets2) ** 2) / 6
    assert jnp.allclose(loss2, ref2, rtol=1e-5, atol=1e-5), (loss2, ref2)

    print("KERNEL_OK")
</pallas_src>

<mosaic_0001>
module attributes {stable_mosaic.version = 11 : i64} {
  func.func @_center_loss_kernel(%arg0: i32, %arg1: memref<8x512xf32, #tpu.memory_space<vmem>>, %arg2: memref<8x512xf32, #tpu.memory_space<vmem>>, %arg3: memref<1x1x512xf32, #tpu.memory_space<vmem>>) attributes {dimension_semantics = [#tpu.dimension_semantics<parallel>], iteration_bounds = array<i64: 1>, scalar_prefetch = 0 : i64, scratch_operands = 0 : i64, tpu.core_type = #tpu.core_type<tc>, window_params = [{transform_indices = @transform_0, window_bounds = array<i64: 8, 512>}, {transform_indices = @transform_1, window_bounds = array<i64: 8, 512>}, {transform_indices = @transform_2, window_bounds = array<i64: 1, 1, 512>}]} {
    %c0 = arith.constant 0 : index
    %c0_0 = arith.constant 0 : index
    %0 = vector.load %arg1[%c0, %c0_0] : memref<8x512xf32, #tpu.memory_space<vmem>>, vector<8x512xf32>
    %c0_1 = arith.constant 0 : index
    %c0_2 = arith.constant 0 : index
    %1 = vector.load %arg2[%c0_1, %c0_2] : memref<8x512xf32, #tpu.memory_space<vmem>>, vector<8x512xf32>
    %2 = arith.subf %0, %1 : vector<8x512xf32>
    %3 = arith.mulf %2, %2 : vector<8x512xf32>
    %cst = arith.constant dense<0.000000e+00> : vector<512xf32>
    %4 = vector.multi_reduction <add>, %3, %cst [0] : vector<8x512xf32> to vector<512xf32>
    %5 = vector.shape_cast %4 : vector<512xf32> to vector<1x512xf32>
    %c0_3 = arith.constant 0 : index
    %c0_4 = arith.constant 0 : index
    %c0_5 = arith.constant 0 : index
    %6 = vector.load %arg3[%c0_3, %c0_4, %c0_5] : memref<1x1x512xf32, #tpu.memory_space<vmem>>, vector<1x1x512xf32>
    %7 = vector.shape_cast %6 : vector<1x1x512xf32> to vector<1x512xf32>
    %8 = vector.shape_cast %5 : vector<1x512xf32> to vector<1x1x512xf32>
    tpu.vector_store %arg3[%c0_3, %c0_4, %c0_5], %8 {strides = array<i32>} : memref<1x1x512xf32, #tpu.memory_space<vmem>>, vector<1x1x512xf32>,
    return
  }
  func.func @transform_0(%arg0: i32) -> (i32, i32) {
    %c0_i32 = arith.constant 0 : i32
    %c0_i32_0 = arith.constant 0 : i32
    return %arg0, %c0_i32 : i32, i32
  }
  func.func @transform_1(%arg0: i32) -> (i32, i32) {
    %c0_i32 = arith.constant 0 : i32
    %c0_i32_0 = arith.constant 0 : i32
    return %arg0, %c0_i32 : i32, i32
  }
  func.func @transform_2(%arg0: i32) -> (i32, i32, i32) {
    %c0_i32 = arith.constant 0 : i32
    %c0_i32_0 = arith.constant 0 : i32
    %c0_i32_1 = arith.constant 0 : i32
    return %arg0, %c0_i32, %c0_i32_0 : i32, i32, i32
  }
}

</mosaic_0001>

<llo_original>
// kernel: tpu_custom_call.1
$region0: #{tpu_custom_call.1}
  #allocation0 [shape = 'u32[]', space=smem, size = 0x4, offset = 0x4, fixed_abs, tag = 'smem constant byte address 0x4 - core index']
  #allocation1 [shape = 'u32[72,128]{1,0:T(1,128)}', space=vmem, size = 0x9000, scoped, tag = 'internal scratch']
  %s0 = inlined_call_operand.hbm [shape: f32[8,512], index: 0, kind: input, shape index: {}]
  %s1 = inlined_call_operand.hbm [shape: f32[8,512], index: 1, kind: input, shape index: {}]
  %s2 = inlined_call_operand.hbm [shape: f32[1,1,512], index: 2, kind: output, shape index: {}]
  %s3 = sld [smem:[#allocation0]]
  $region26: #{tpu_custom_call.1} parent=0
    _
  %s5 = ssub.s32 1, %s3
  %s6 = scalar_select 0, %s5, %s3
  $region1: #{tpu_custom_call.1} parent=0
    #allocation2 [shape = 'u8[16384]{0}', space=vmem, size = 0x4000, scoped, tag = 'input window, operand 0, single buffered']
    #allocation3 [shape = 's32[1]{0}', space=sflag, size = 0x4, scoped, tag = 'scoped memory for tpu_custom_call.1']
    #allocation4 [shape = 's32[1]{0}', space=sflag, size = 0x4, scoped, tag = 'scoped memory for tpu_custom_call.1']
    #allocation5 [shape = 'u8[16384]{0}', space=vmem, size = 0x4000, scoped, tag = 'input window, operand 1, single buffered']
    #allocation6 [shape = 's32[1]{0}', space=sflag, size = 0x4, scoped, tag = 'scoped memory for tpu_custom_call.1']
    #allocation7 [shape = 'u8[2048]{0}', space=vmem, size = 0x800, scoped, tag = 'output window, operand 0, single buffered']
    %7 = vsyncpa [#allocation3], 0
    %8 = vsyncpa [#allocation6], 0
    %9 = vsyncpa [#allocation4], 0
    // Predicated region
    $region2: #{tpu_custom_call.1} parent=1 // pred_check
      _
    $region3: #{tpu_custom_call.1} parent=1 // pred_check_branch
      %11 = sbr.rel (0) target = $region5
    $region4: #{tpu_custom_call.1} parent=1 // pred_region
      %13 = vsyncadd [#allocation3], 0
      %s15 = sshll.u32 %s0, 4
      %s16 = int_to_ptr.hbm [resolvable:$true] %s15
      %s17 = sshll.u32 [#allocation2], 4
      %s18 = int_to_ptr.vmem [resolvable:$true] %s17
      %20 = dma.hbm_to_vmem [thread:$0]  %s16, 512, %s18, [#allocation3]
    $region5: #{tpu_custom_call.1} parent=1 // pred_fallthru
      _
    // Predicated region
    $region6: #{tpu_custom_call.1} parent=1 // pred_check
      _
    $region7: #{tpu_custom_call.1} parent=1 // pred_check_branch
      %22 = sbr.rel (0) target = $region9
    $region8: #{tpu_custom_call.1} parent=1 // pred_region
      %24 = vsyncadd [#allocation6], 0
      %s26 = sshll.u32 %s1, 4
      %s27 = int_to_ptr.hbm [resolvable:$true] %s26
      %s28 = sshll.u32 [#allocation5], 4
      %s29 = int_to_ptr.vmem [resolvable:$true] %s28
      %31 = dma.hbm_to_vmem [thread:$0]  %s27, 512, %s29, [#allocation6]
    $region9: #{tpu_custom_call.1} parent=1 // pred_fallthru
      _
    // Predicated region
    $region10: #{tpu_custom_call.1} parent=1 // pred_check
      _
    $region11: #{tpu_custom_call.1} parent=1 // pred_check_branch
      %33 = sbr.rel (0) target = $region13
    $region12: #{tpu_custom_call.1} parent=1 // pred_region
      %35 = dma.done [#allocation3], 512
    $region13: #{tpu_custom_call.1} parent=1 // pred_fallthru
      _
    // Predicated region
    $region14: #{tpu_custom_call.1} parent=1 // pred_check
      _
    $region15: #{tpu_custom_call.1} parent=1 // pred_check_branch
      %37 = sbr.rel (0) target = $region17
    $region16: #{tpu_custom_call.1} parent=1 // pred_region
      %39 = dma.done [#allocation6], 512
    $region17: #{tpu_custom_call.1} parent=1 // pred_fallthru
      _
    %v40 = vld [vmem:[#allocation2] sm:$0xff]
    %v41 = vld [vmem:[#allocation2 + $0x8] sm:$0xff]
    %v42 = vld [vmem:[#allocation2 + $0x10] sm:$0xff]
    %v43 = vld [vmem:[#allocation2 + $0x18] sm:$0xff]
    %v44 = vld [vmem:[#allocation5] sm:$0xff]
    %v45 = vld [vmem:[#allocation5 + $0x8] sm:$0xff]
    %v46 = vld [vmem:[#allocation5 + $0x10] sm:$0xff]
    %v47 = vld [vmem:[#allocation5 + $0x18] sm:$0xff]
    %v48 = vsub.f32 %v40, %v44
    %v49 = vsub.f32 %v41, %v45
    %v50 = vsub.f32 %v42, %v46
    %v51 = vsub.f32 %v43, %v47
    %v52 = vmul.f32 %v48, %v48
    %v53 = vmul.f32 %v49, %v49
    %v54 = vmul.f32 %v50, %v50
    %v55 = vmul.f32 %v51, %v51
    %v56 = vrot.slane %v52, 4
    %v57 = vadd.f32 %v52, %v56
    %v58 = vrot.slane %v57, 2
    %v59 = vadd.f32 %v57, %v58
    %v60 = vrot.slane %v59, 1
    %v61 = vadd.f32 %v59, %v60
    %v62 = vrot.slane %v53, 4
    %v63 = vadd.f32 %v53, %v62
    %v64 = vrot.slane %v63, 2
    %v65 = vadd.f32 %v63, %v64
    %v66 = vrot.slane %v65, 1
    %v67 = vadd.f32 %v65, %v66
    %v68 = vrot.slane %v54, 4
    %v69 = vadd.f32 %v54, %v68
    %v70 = vrot.slane %v69, 2
    %v71 = vadd.f32 %v69, %v70
    %v72 = vrot.slane %v71, 1
    %v73 = vadd.f32 %v71, %v72
    %v74 = vrot.slane %v55, 4
    %v75 = vadd.f32 %v55, %v74
    %v76 = vrot.slane %v75, 2
    %v77 = vadd.f32 %v75, %v76
    %v78 = vrot.slane %v77, 1
    %v79 = vadd.f32 %v77, %v78
    %v84 = vrot.slane %v67, 7
    %v85 = vrot.slane %v73, 6
    %v86 = vrot.slane %v79, 5
    %vm87 = vcmask 1040384
    %v88 = vsel %vm87, %v61, %v84
    %vm89 = vcmask 1042434
    %v90 = vsel %vm89, %v85, %v86
    %vm91 = vcmask 1041408
    %v92 = vsel %vm91, %v88, %v90
    %v94 = vlaneseq
    %vm95 = vcmp.ge.s32.totalorder %v94, 0
    %vm96 = vcmp.lt.s32.totalorder %v94, 512
    %vm97 = vmand %vm95, %vm96
    %98 = vst.msk [vmem:[#allocation7] sm:$0xf] %vm97, %v92
    // Predicated region
    $region18: #{tpu_custom_call.1} parent=1 // pred_check
      _
    $region19: #{tpu_custom_call.1} parent=1 // pred_check_branch
      %100 = sbr.rel (0) target = $region21
    $region20: #{tpu_custom_call.1} parent=1 // pred_region
      %102 = vsyncadd [#allocation4], 0
      %s104 = sshll.u32 [#allocation7], 4
      %s105 = int_to_ptr.vmem [resolvable:$true] %s104
      %s106 = sshll.u32 %s2, 4
      %s107 = int_to_ptr.hbm [resolvable:$true] %s106
      %109 = dma.vmem_to_hbm [thread:$0]  %s105, 64, %s107, [#allocation4]
    $region21: #{tpu_custom_call.1} parent=1 // pred_fallthru
      _
    // Predicated region
    $region22: #{tpu_custom_call.1} parent=1 // pred_check
      _
    $region23: #{tpu_custom_call.1} parent=1 // pred_check_branch
      %111 = sbr.rel (0) target = $region25
    $region24: #{tpu_custom_call.1} parent=1 // pred_region
      %113 = dma.done [#allocation4], 64
    $region25: #{tpu_custom_call.1} parent=1 // pred_fallthru
      _
    %114 = vsyncpa [#allocation3], 1
    %115 = vsyncpa [#allocation6], 1
    %116 = vsyncpa [#allocation4], 1

</llo_original>
